<compile_context>
chip_gen: v6e
topology: v6e:2x2x1
jax: 0.10.0
libtpu: 0.0.40
codegen_flags: <defaults>
</compile_context>

<pallas_src>
import jax
import jax.numpy as jnp
from jax.experimental import pallas as pl
from jax.experimental.pallas import tpu as pltpu


def _round_up(x, m):
    return ((x + m - 1) // m) * m


def _num_tensorcores():
    """2 on v7x-class (2 TC/chip) parts, else 1. Conservative on failure."""
    try:
        kind = jax.devices()[0].device_kind.lower()
        if "v7" in kind or "7x" in kind:
            return 2
    except Exception:
        pass
    return 1


def _mapping_block_kernel(x_ref, w_ref, b_ref, o_ref):
    # bf16 x bf16 -> f32 accumulate on the MXU.
    y = jnp.dot(x_ref[...], w_ref[...], preferred_element_type=jnp.float32)
    y = y + b_ref[...]                  # f32 bias broadcast over rows
    y = jnp.maximum(y, 0.2 * y)         # exact LeakyReLU(0.2): vmul + vmax
    o_ref[...] = y.astype(o_ref.dtype)


def mapping_block(x, w_t, b, *, tm=512):
    """x: (M, K); w_t: (K, N) (transposed PyTorch weight); b: (N,). Returns (M, N)."""
    M, K = x.shape
    Kw, N = w_t.shape
    assert K == Kw and b.shape == (N,)
    out_dtype = x.dtype

    # Feed the MXU bf16; keep bias (and all accumulation) in f32.
    xb = x.astype(jnp.bfloat16)
    wb = w_t.astype(jnp.bfloat16)
    b2 = b.astype(jnp.float32).reshape(1, N)

    if M <= tm:
        # Small-batch path: x, W, bias, out all resident; single M block.
        m_pad = max(_round_up(M, 8), 8)
        if m_pad != M:
            xb = jnp.pad(xb, ((0, m_pad - M), (0, 0)))
        # On a 2-TC part, split N so each TensorCore loads/computes half of W.
        n_splits = 2 if (_num_tensorcores() >= 2 and N % 256 == 0) else 1
        tn = N // n_splits
        grid = (n_splits,)
        in_specs = [
            pl.BlockSpec((m_pad, K), lambda j: (0, 0)),   # x, resident
            pl.BlockSpec((K, tn), lambda j: (0, j)),      # W column slab
            pl.BlockSpec((1, tn), lambda j: (0, j)),      # bias slab
        ]
        out_specs = pl.BlockSpec((m_pad, tn), lambda j: (0, j))  # lane-dense
        m_total = m_pad
    else:
        # Large-batch path: tile only M; pad ragged M so every block is full
        # (keeps the x/out pipeline and VMEM footprint bounded on all gens).
        m_total = _round_up(M, tm)
        if m_total != M:
            xb = jnp.pad(xb, ((0, m_total - M), (0, 0)))
        grid = (m_total // tm,)
        in_specs = [
            pl.BlockSpec((tm, K), lambda i: (i, 0)),      # x rows tile
            pl.BlockSpec((K, N), lambda i: (0, 0)),       # full weight, resident
            pl.BlockSpec((1, N), lambda i: (0, 0)),       # bias, resident
        ]
        out_specs = pl.BlockSpec((tm, N), lambda i: (i, 0))      # lane-dense

    bytes_accessed = (
        m_total * K * 2      # x (bf16)
        + K * N * 2          # W (bf16)
        + N * 4              # bias (f32)
        + m_total * N * jnp.dtype(out_dtype).itemsize  # out
    )
    cost = pl.CostEstimate(
        flops=2 * m_total * K * N,
        transcendentals=0,
        bytes_accessed=bytes_accessed,
    )

    out = pl.pallas_call(
        _mapping_block_kernel,
        out_shape=jax.ShapeDtypeStruct((m_total, N), out_dtype),
        grid_spec=pltpu.PrefetchScalarGridSpec(
            num_scalar_prefetch=0,
            grid=grid,
            in_specs=in_specs,
            out_specs=out_specs,
        ),
        compiler_params=pltpu.CompilerParams(
            dimension_semantics=("parallel",),
        ),
        cost_estimate=cost,
    )(xb, wb, b2)

    if m_total != M:
        out = out[:M]
    return out


def _reference(x, w_t, b):
    """Reference matching the kernel's numerics: bf16 inputs, f32 accumulate."""
    xf = x.astype(jnp.bfloat16).astype(jnp.float32)
    wf = w_t.astype(jnp.bfloat16).astype(jnp.float32)
    y = xf @ wf + b
    return jnp.where(y >= 0, y, 0.2 * y)


def _reference_f32(x, w_t, b):
    y = x @ w_t + b
    return jnp.where(y >= 0, y, 0.2 * y)


if __name__ == "__main__":
    key = jax.random.PRNGKey(0)
    k_x, k_w, k_b = jax.random.split(key, 3)

    M, D = 8, 512  # small batch; hidden = 512 fixed by the module

    x = jax.random.normal(k_x, (M, D), dtype=jnp.float32)
    # Deterministic "Linear(512, 512)" params; PyTorch weight is (out, in).
    w = jax.random.normal(k_w, (D, D), dtype=jnp.float32) * 0.02  # (out, in)
    b = jax.random.normal(k_b, (D,), dtype=jnp.float32) * 0.02

    w_t = w.T  # (in, out) layout for the kernel

    out = mapping_block(x, w_t, b)
    out = jax.block_until_ready(out)
    assert out.shape == (M, D)
    assert out.dtype == x.dtype

    # Tight check against a bf16-input / f32-accumulate reference (same numerics
    # as the MXU path), plus a loose sanity check against the pure f32 module.
    ref_bf16 = _reference(x, w_t, b)
    assert jnp.allclose(out, ref_bf16, atol=1e-3, rtol=1e-3)
    ref_f32 = _reference_f32(x, w_t, b)
    assert jnp.allclose(out, ref_f32, atol=3e-2, rtol=3e-2)

    print("KERNEL_OK")
</pallas_src>

<mosaic_0001>
module attributes {stable_mosaic.version = 11 : i64} {
  func.func @_mapping_block_kernel(%arg0: i32, %arg1: memref<8x512xbf16, #tpu.memory_space<vmem>>, %arg2: memref<512x512xbf16, #tpu.memory_space<vmem>>, %arg3: memref<1x512xf32, #tpu.memory_space<vmem>>, %arg4: memref<8x512xf32, #tpu.memory_space<vmem>>) attributes {dimension_semantics = [#tpu.dimension_semantics<parallel>], iteration_bounds = array<i64: 1>, scalar_prefetch = 0 : i64, scratch_operands = 0 : i64, tpu.core_type = #tpu.core_type<tc>, window_params = [{pipeline_mode = #tpu.pipeline_mode<synchronous>, transform_indices = @transform_0, window_bounds = array<i64: 8, 512>}, {transform_indices = @transform_1, window_bounds = array<i64: 512, 512>}, {transform_indices = @transform_2, window_bounds = array<i64: 1, 512>}, {transform_indices = @transform_3, window_bounds = array<i64: 8, 512>}]} {
    %c0 = arith.constant 0 : index
    %c0_0 = arith.constant 0 : index
    %0 = vector.load %arg1[%c0, %c0_0] : memref<8x512xbf16, #tpu.memory_space<vmem>>, vector<8x512xbf16>
    %c0_1 = arith.constant 0 : index
    %c0_2 = arith.constant 0 : index
    %1 = vector.load %arg2[%c0_1, %c0_2] : memref<512x512xbf16, #tpu.memory_space<vmem>>, vector<512x512xbf16>
    %cst = arith.constant dense<0.000000e+00> : vector<8x512xf32>
    %2 = tpu.matmul %0, %1, %cst {dimension_numbers = #tpu.dot_dimension_numbers<[1], [0], [0], [1], [0, 0, 1, 1], [], []>} : vector<8x512xbf16>, vector<512x512xbf16>, vector<8x512xf32> -> vector<8x512xf32>
    %c0_3 = arith.constant 0 : index
    %c0_4 = arith.constant 0 : index
    %3 = vector.load %arg3[%c0_3, %c0_4] : memref<1x512xf32, #tpu.memory_space<vmem>>, vector<1x512xf32>
    %4 = vector.broadcast %3 : vector<1x512xf32> to vector<8x512xf32>
    %5 = arith.addf %2, %4 : vector<8x512xf32>
    %cst_5 = arith.constant 2.000000e-01 : f32
    %6 = vector.broadcast %cst_5 : f32 to vector<8x512xf32>
    %7 = arith.mulf %6, %5 : vector<8x512xf32>
    %8 = arith.maximumf %5, %7 : vector<8x512xf32>
    %c0_6 = arith.constant 0 : index
    %c0_7 = arith.constant 0 : index
    %9 = vector.load %arg4[%c0_6, %c0_7] : memref<8x512xf32, #tpu.memory_space<vmem>>, vector<8x512xf32>
    tpu.vector_store %arg4[%c0_6, %c0_7], %8 {strides = array<i32>} : memref<8x512xf32, #tpu.memory_space<vmem>>, vector<8x512xf32>,
    return
  }
  func.func @transform_0(%arg0: i32) -> (i32, i32) {
    %c0_i32 = arith.constant 0 : i32
    %c0_i32_0 = arith.constant 0 : i32
    %c0_i32_1 = arith.constant 0 : i32
    return %c0_i32, %c0_i32_0 : i32, i32
  }
  func.func @transform_1(%arg0: i32) -> (i32, i32) {
    %c0_i32 = arith.constant 0 : i32
    %c0_i32_0 = arith.constant 0 : i32
    return %c0_i32, %arg0 : i32, i32
  }
  func.func @transform_2(%arg0: i32) -> (i32, i32) {
    %c0_i32 = arith.constant 0 : i32
    %c0_i32_0 = arith.constant 0 : i32
    return %c0_i32, %arg0 : i32, i32
  }
  func.func @transform_3(%arg0: i32) -> (i32, i32) {
    %c0_i32 = arith.constant 0 : i32
    %c0_i32_0 = arith.constant 0 : i32
    return %c0_i32, %arg0 : i32, i32
  }
}

</mosaic_0001>

<llo_original>
// kernel: tpu_custom_call.1
$region0: #{tpu_custom_call.1}
  #allocation0 [shape = 'u32[]', space=smem, size = 0x4, offset = 0x4, fixed_abs, tag = 'smem constant byte address 0x4 - core index']
  #allocation1 [shape = 'u32[144,128]{1,0:T(1,128)}', space=vmem, size = 0x12000, scoped, tag = 'internal scratch']
  %s0 = inlined_call_operand.hbm [shape: bf16[8,512], index: 0, kind: input, shape index: {}]
  %s1 = inlined_call_operand.hbm [shape: bf16[512,512], index: 1, kind: input, shape index: {}]
  %s2 = inlined_call_operand.hbm [shape: f32[1,512], index: 2, kind: input, shape index: {}]
  %s3 = inlined_call_operand.hbm [shape: f32[8,512], index: 3, kind: output, shape index: {}]
  %s4 = sld [smem:[#allocation0]]
  $region34: #{tpu_custom_call.1} parent=0
    _
  %s6 = ssub.s32 1, %s4
  %s7 = scalar_select 0, %s6, %s4
  $region1: #{tpu_custom_call.1} parent=0
    #allocation2 [shape = 'u8[8192]{0}', space=vmem, size = 0x2000, scoped, tag = 'input window, operand 0, single buffered']
    #allocation3 [shape = 's32[1]{0}', space=sflag, size = 0x4, scoped, tag = 'scoped memory for tpu_custom_call.1']
    #allocation4 [shape = 's32[1]{0}', space=sflag, size = 0x4, scoped, tag = 'scoped memory for tpu_custom_call.1']
    #allocation5 [shape = 'u8[524288]{0}', space=vmem, size = 0x80000, scoped, tag = 'input window, operand 1, single buffered']
    #allocation6 [shape = 's32[1]{0}', space=sflag, size = 0x4, scoped, tag = 'scoped memory for tpu_custom_call.1']
    #allocation7 [shape = 'u8[2048]{0}', space=vmem, size = 0x800, scoped, tag = 'input window, operand 2, single buffered']
    #allocation8 [shape = 'u8[16384]{0}', space=vmem, size = 0x4000, scoped, tag = 'output window, operand 0, single buffered']
    %8 = vsyncpa [#allocation3], 0
    %9 = vsyncpa [#allocation6], 0
    %10 = vsyncpa [#allocation4], 0
    // Predicated region
    $region2: #{tpu_custom_call.1} parent=1 // pred_check
      _
    $region3: #{tpu_custom_call.1} parent=1 // pred_check_branch
      %12 = sbr.rel (0) target = $region5
    $region4: #{tpu_custom_call.1} parent=1 // pred_region
      %s14 = ssub.s32 256, 256
      %15 = vsyncadd [#allocation3], %s14
      %s17 = sshll.u32 [#allocation2], 4
      %s18 = int_to_ptr.vmem [resolvable:$true] %s17
      %20 = dma.hbm_to_vmem [thread:$0]  %s0, 256, %s18, [#allocation3]
    $region5: #{tpu_custom_call.1} parent=1 // pred_fallthru
      _
    // Predicated region
    $region6: #{tpu_custom_call.1} parent=1 // pred_check
      _
    $region7: #{tpu_custom_call.1} parent=1 // pred_check_branch
      %22 = sbr.rel (0) target = $region9
    $region8: #{tpu_custom_call.1} parent=1 // pred_region
      %s24 = ssub.s32 16384, 16384
      %25 = vsyncadd [#allocation6], %s24
      %s26 = sshll.u32 [#allocation5], 4
      %s27 = int_to_ptr.vmem [resolvable:$true] %s26
      %32 = dma.hbm_to_vmem [thread:$0]  %s1, 16384, %s27, [#allocation6], 256, 256, 16
    $region9: #{tpu_custom_call.1} parent=1 // pred_fallthru
      _
    // Predicated region
    $region10: #{tpu_custom_call.1} parent=1 // pred_check
      _
    $region11: #{tpu_custom_call.1} parent=1 // pred_check_branch
      %34 = sbr.rel (0) target = $region13
    $region12: #{tpu_custom_call.1} parent=1 // pred_region
      %s36 = ssub.s32 64, 64
      %37 = vsyncadd [#allocation6], %s36
      %s39 = sshll.u32 [#allocation7], 4
      %s40 = int_to_ptr.vmem [resolvable:$true] %s39
      %42 = dma.hbm_to_vmem [thread:$0]  %s2, 64, %s40, [#allocation6]
    $region13: #{tpu_custom_call.1} parent=1 // pred_fallthru
      _
    // Predicated region
    $region14: #{tpu_custom_call.1} parent=1 // pred_check
      _
    $region15: #{tpu_custom_call.1} parent=1 // pred_check_branch
      %44 = sbr.rel (0) target = $region17
    $region16: #{tpu_custom_call.1} parent=1 // pred_region
      %45 = dma.done [#allocation3], 256
    $region17: #{tpu_custom_call.1} parent=1 // pred_fallthru
      _
    // Predicated region
    $region18: #{tpu_custom_call.1} parent=1 // pred_check
      _
    $region19: #{tpu_custom_call.1} parent=1 // pred_check_branch
      %47 = sbr.rel (0) target = $region21
    $region20: #{tpu_custom_call.1} parent=1 // pred_region
      %48 = dma.done [#allocation6], 16384
    $region21: #{tpu_custom_call.1} parent=1 // pred_fallthru
      _
    // Predicated region
    $region22: #{tpu_custom_call.1} parent=1 // pred_check
      _
    $region23: #{tpu_custom_call.1} parent=1 // pred_check_branch
      %50 = sbr.rel (0) target = $region25
    $region24: #{tpu_custom_call.1} parent=1 // pred_region
      %51 = dma.done [#allocation6], 64
    $region25: #{tpu_custom_call.1} parent=1 // pred_fallthru
      _
    %v52 = vld [vmem:[#allocation2] sm:$0xff]
    %v53 = vld [vmem:[#allocation2 + $0x8] sm:$0xff]
    %v54 = vld [vmem:[#allocation5] sm:$0xff]
    %v55 = vld [vmem:[#allocation5 + $0x8] sm:$0xff]
    %v56 = vld [vmem:[#allocation5 + $0x10] sm:$0xff]
    %v57 = vld [vmem:[#allocation5 + $0x18] sm:$0xff]
    %v58 = vld [vmem:[#allocation5 + $0x20] sm:$0xff]
    %v59 = vld [vmem:[#allocation5 + $0x28] sm:$0xff]
    %v60 = vld [vmem:[#allocation5 + $0x30] sm:$0xff]
    %v61 = vld [vmem:[#allocation5 + $0x38] sm:$0xff]
    %v62 = vld [vmem:[#allocation5 + $0x40] sm:$0xff]
    %v63 = vld [vmem:[#allocation5 + $0x48] sm:$0xff]
    %v64 = vld [vmem:[#allocation5 + $0x50] sm:$0xff]
    %v65 = vld [vmem:[#allocation5 + $0x58] sm:$0xff]
    %v66 = vld [vmem:[#allocation5 + $0x60] sm:$0xff]
    %v67 = vld [vmem:[#allocation5 + $0x68] sm:$0xff]
    %v68 = vld [vmem:[#allocation5 + $0x70] sm:$0xff]
    %v69 = vld [vmem:[#allocation5 + $0x78] sm:$0xff]
    %v70 = vld [vmem:[#allocation5 + $0x80] sm:$0xff]
    %v71 = vld [vmem:[#allocation5 + $0x88] sm:$0xff]
    %v72 = vld [vmem:[#allocation5 + $0x90] sm:$0xff]
    %v73 = vld [vmem:[#allocation5 + $0x98] sm:$0xff]
    %v74 = vld [vmem:[#allocation5 + $0xa0] sm:$0xff]
    %v75 = vld [vmem:[#allocation5 + $0xa8] sm:$0xff]
    %v76 = vld [vmem:[#allocation5 + $0xb0] sm:$0xff]
    %v77 = vld [vmem:[#allocation5 + $0xb8] sm:$0xff]
    %v78 = vld [vmem:[#allocation5 + $0xc0] sm:$0xff]
    %v79 = vld [vmem:[#allocation5 + $0xc8] sm:$0xff]
    %v80 = vld [vmem:[#allocation5 + $0xd0] sm:$0xff]
    %v81 = vld [vmem:[#allocation5 + $0xd8] sm:$0xff]
    %v82 = vld [vmem:[#allocation5 + $0xe0] sm:$0xff]
    %v83 = vld [vmem:[#allocation5 + $0xe8] sm:$0xff]
    %v84 = vld [vmem:[#allocation5 + $0xf0] sm:$0xff]
    %v85 = vld [vmem:[#allocation5 + $0xf8] sm:$0xff]
    %v86 = vld [vmem:[#allocation5 + $0x100] sm:$0xff]
    %v87 = vld [vmem:[#allocation5 + $0x108] sm:$0xff]
    %v88 = vld [vmem:[#allocation5 + $0x110] sm:$0xff]
    %v89 = vld [vmem:[#allocation5 + $0x118] sm:$0xff]
    %v90 = vld [vmem:[#allocation5 + $0x120] sm:$0xff]
    %v91 = vld [vmem:[#allocation5 + $0x128] sm:$0xff]
    %v92 = vld [vmem:[#allocation5 + $0x130] sm:$0xff]
    %v93 = vld [vmem:[#allocation5 + $0x138] sm:$0xff]
    %v94 = vld [vmem:[#allocation5 + $0x140] sm:$0xff]
    %v95 = vld [vmem:[#allocation5 + $0x148] sm:$0xff]
    %v96 = vld [vmem:[#allocation5 + $0x150] sm:$0xff]
    %v97 = vld [vmem:[#allocation5 + $0x158] sm:$0xff]
    %v98 = vld [vmem:[#allocation5 + $0x160] sm:$0xff]
    %v99 = vld [vmem:[#allocation5 + $0x168] sm:$0xff]
    %v100 = vld [vmem:[#allocation5 + $0x170] sm:$0xff]
    %v101 = vld [vmem:[#allocation5 + $0x178] sm:$0xff]
    %v102 = vld [vmem:[#allocation5 + $0x180] sm:$0xff]
    %v103 = vld [vmem:[#allocation5 + $0x188] sm:$0xff]
    %v104 = vld [vmem:[#allocation5 + $0x190] sm:$0xff]
    %v105 = vld [vmem:[#allocation5 + $0x198] sm:$0xff]
    %v106 = vld [vmem:[#allocation5 + $0x1a0] sm:$0xff]
    %v107 = vld [vmem:[#allocation5 + $0x1a8] sm:$0xff]
    %v108 = vld [vmem:[#allocation5 + $0x1b0] sm:$0xff]
    %v109 = vld [vmem:[#allocation5 + $0x1b8] sm:$0xff]
    %v110 = vld [vmem:[#allocation5 + $0x1c0] sm:$0xff]
    %v111 = vld [vmem:[#allocation5 + $0x1c8] sm:$0xff]
    %v112 = vld [vmem:[#allocation5 + $0x1d0] sm:$0xff]
    %v113 = vld [vmem:[#allocation5 + $0x1d8] sm:$0xff]
    %v114 = vld [vmem:[#allocation5 + $0x1e0] sm:$0xff]
    %v115 = vld [vmem:[#allocation5 + $0x1e8] sm:$0xff]
    %v116 = vld [vmem:[#allocation5 + $0x1f0] sm:$0xff]
    %v117 = vld [vmem:[#allocation5 + $0x1f8] sm:$0xff]
    %v118 = vld [vmem:[#allocation5 + $0x200] sm:$0xff]
    %v119 = vld [vmem:[#allocation5 + $0x208] sm:$0xff]
    %v120 = vld [vmem:[#allocation5 + $0x210] sm:$0xff]
    %v121 = vld [vmem:[#allocation5 + $0x218] sm:$0xff]
    %v122 = vld [vmem:[#allocation5 + $0x220] sm:$0xff]
    %v123 = vld [vmem:[#allocation5 + $0x228] sm:$0xff]
    %v124 = vld [vmem:[#allocation5 + $0x230] sm:$0xff]
    %v125 = vld [vmem:[#allocation5 + $0x238] sm:$0xff]
    %v126 = vld [vmem:[#allocation5 + $0x240] sm:$0xff]
    %v127 = vld [vmem:[#allocation5 + $0x248] sm:$0xff]
    %v128 = vld [vmem:[#allocation5 + $0x250] sm:$0xff]
    %v129 = vld [vmem:[#allocation5 + $0x258] sm:$0xff]
    %v130 = vld [vmem:[#allocation5 + $0x260] sm:$0xff]
    %v131 = vld [vmem:[#allocation5 + $0x268] sm:$0xff]
    %v132 = vld [vmem:[#allocation5 + $0x270] sm:$0xff]
    %v133 = vld [vmem:[#allocation5 + $0x278] sm:$0xff]
    %v134 = vld [vmem:[#allocation5 + $0x280] sm:$0xff]
    %v135 = vld [vmem:[#allocation5 + $0x288] sm:$0xff]
    %v136 = vld [vmem:[#allocation5 + $0x290] sm:$0xff]
    %v137 = vld [vmem:[#allocation5 + $0x298] sm:$0xff]
    %v138 = vld [vmem:[#allocation5 + $0x2a0] sm:$0xff]
    %v139 = vld [vmem:[#allocation5 + $0x2a8] sm:$0xff]
    %v140 = vld [vmem:[#allocation5 + $0x2b0] sm:$0xff]
    %v141 = vld [vmem:[#allocation5 + $0x2b8] sm:$0xff]
    %v142 = vld [vmem:[#allocation5 + $0x2c0] sm:$0xff]
    %v143 = vld [vmem:[#allocation5 + $0x2c8] sm:$0xff]
    %v144 = vld [vmem:[#allocation5 + $0x2d0] sm:$0xff]
    %v145 = vld [vmem:[#allocation5 + $0x2d8] sm:$0xff]
    %v146 = vld [vmem:[#allocation5 + $0x2e0] sm:$0xff]
    %v147 = vld [vmem:[#allocation5 + $0x2e8] sm:$0xff]
    %v148 = vld [vmem:[#allocation5 + $0x2f0] sm:$0xff]
    %v149 = vld [vmem:[#allocation5 + $0x2f8] sm:$0xff]
    %v150 = vld [vmem:[#allocation5 + $0x300] sm:$0xff]
    %v151 = vld [vmem:[#allocation5 + $0x308] sm:$0xff]
    %v152 = vld [vmem:[#allocation5 + $0x310] sm:$0xff]
    %v153 = vld [vmem:[#allocation5 + $0x318] sm:$0xff]
    %v154 = vld [vmem:[#allocation5 + $0x320] sm:$0xff]
    %v155 = vld [vmem:[#allocation5 + $0x328] sm:$0xff]
    %v156 = vld [vmem:[#allocation5 + $0x330] sm:$0xff]
    %v157 = vld [vmem:[#allocation5 + $0x338] sm:$0xff]
    %v158 = vld [vmem:[#allocation5 + $0x340] sm:$0xff]
    %v159 = vld [vmem:[#allocation5 + $0x348] sm:$0xff]
    %v160 = vld [vmem:[#allocation5 + $0x350] sm:$0xff]
    %v161 = vld [vmem:[#allocation5 + $0x358] sm:$0xff]
    %v162 = vld [vmem:[#allocation5 + $0x360] sm:$0xff]
    %v163 = vld [vmem:[#allocation5 + $0x368] sm:$0xff]
    %v164 = vld [vmem:[#allocation5 + $0x370] sm:$0xff]
    %v165 = vld [vmem:[#allocation5 + $0x378] sm:$0xff]
    %v166 = vld [vmem:[#allocation5 + $0x380] sm:$0xff]
    %v167 = vld [vmem:[#allocation5 + $0x388] sm:$0xff]
    %v168 = vld [vmem:[#allocation5 + $0x390] sm:$0xff]
    %v169 = vld [vmem:[#allocation5 + $0x398] sm:$0xff]
    %v170 = vld [vmem:[#allocation5 + $0x3a0] sm:$0xff]
    %v171 = vld [vmem:[#allocation5 + $0x3a8] sm:$0xff]
    %v172 = vld [vmem:[#allocation5 + $0x3b0] sm:$0xff]
    %v173 = vld [vmem:[#allocation5 + $0x3b8] sm:$0xff]
    %v174 = vld [vmem:[#allocation5 + $0x3c0] sm:$0xff]
    %v175 = vld [vmem:[#allocation5 + $0x3c8] sm:$0xff]
    %v176 = vld [vmem:[#allocation5 + $0x3d0] sm:$0xff]
    %v177 = vld [vmem:[#allocation5 + $0x3d8] sm:$0xff]
    %v178 = vld [vmem:[#allocation5 + $0x3e0] sm:$0xff]
    %v179 = vld [vmem:[#allocation5 + $0x3e8] sm:$0xff]
    %v180 = vld [vmem:[#allocation5 + $0x3f0] sm:$0xff]
    %v181 = vld [vmem:[#allocation5 + $0x3f8] sm:$0xff]
    %v182 = vld [vmem:[#allocation7] sm:$0xf]
    %v184 = vlaneseq
    %v185 = vshrl.u32 %v184, 7
    %v186 = vsub.s32 0, %v185
    %v187 = vrot.slane %v182, %v186
    %v188 = vlaneseq
    %v189 = vshrl.u32 %v188, 7
    %v190 = vsub.s32 1, %v189
    %v191 = vrot.slane %v182, %v190
    %v192 = vlaneseq
    %v193 = vshrl.u32 %v192, 7
    %v194 = vsub.s32 2, %v193
    %v195 = vrot.slane %v182, %v194
    %v196 = vlaneseq
    %v197 = vshrl.u32 %v196, 7
    %v198 = vsub.s32 3, %v197
    %v199 = vrot.slane %v182, %v198
    %v206 = vunpack.c.l.b16 %v52
    %v207 = vunpack.c.h.b16 %v52
    %v208 = vunpack.c.l.b16 %v53
    %v209 = vunpack.c.h.b16 %v53
    %v210 = vpack.c.b16 %v206, %v206
    %v211 = vpack.c.b16 %v207, %v207
    %v212 = vpack.c.b16 %v208, %v208
    %v213 = vpack.c.b16 %v209, %v209
    %v346 = vunpack.c.l.b16 %v54
    %v347 = vunpack.c.h.b16 %v54
    %v348 = vunpack.c.l.b16 %v55
    %v349 = vunpack.c.h.b16 %v55
    %v350 = vunpack.c.l.b16 %v56
    %v351 = vunpack.c.h.b16 %v56
    %v352 = vunpack.c.l.b16 %v57
    %v353 = vunpack.c.h.b16 %v57
    %v354 = vunpack.c.l.b16 %v58
    %v355 = vunpack.c.h.b16 %v58
    %v356 = vunpack.c.l.b16 %v59
    %v357 = vunpack.c.h.b16 %v59
    %v358 = vunpack.c.l.b16 %v60
    %v359 = vunpack.c.h.b16 %v60
    %v360 = vunpack.c.l.b16 %v61
    %v361 = vunpack.c.h.b16 %v61
    %v362 = vunpack.c.l.b16 %v62
    %v363 = vunpack.c.h.b16 %v62
    %v364 = vunpack.c.l.b16 %v63
    %v365 = vunpack.c.h.b16 %v63
    %v366 = vunpack.c.l.b16 %v64
    %v367 = vunpack.c.h.b16 %v64
    %v368 = vunpack.c.l.b16 %v65
    %v369 = vunpack.c.h.b16 %v65
    %v370 = vunpack.c.l.b16 %v66
    %v371 = vunpack.c.h.b16 %v66
    %v372 = vunpack.c.l.b16 %v67
    %v373 = vunpack.c.h.b16 %v67
    %v374 = vunpack.c.l.b16 %v68
    %v375 = vunpack.c.h.b16 %v68
    %v376 = vunpack.c.l.b16 %v69
    %v377 = vunpack.c.h.b16 %v69
    %v378 = vunpack.c.l.b16 %v70
    %v379 = vunpack.c.h.b16 %v70
    %v380 = vunpack.c.l.b16 %v71
    %v381 = vunpack.c.h.b16 %v71
    %v382 = vunpack.c.l.b16 %v72
    %v383 = vunpack.c.h.b16 %v72
    %v384 = vunpack.c.l.b16 %v73
    %v385 = vunpack.c.h.b16 %v73
    %v386 = vunpack.c.l.b16 %v74
    %v387 = vunpack.c.h.b16 %v74
    %v388 = vunpack.c.l.b16 %v75
    %v389 = vunpack.c.h.b16 %v75
    %v390 = vunpack.c.l.b16 %v76
    %v391 = vunpack.c.h.b16 %v76
    %v392 = vunpack.c.l.b16 %v77
    %v393 = vunpack.c.h.b16 %v77
    %v394 = vunpack.c.l.b16 %v78
    %v395 = vunpack.c.h.b16 %v78
    %v396 = vunpack.c.l.b16 %v79
    %v397 = vunpack.c.h.b16 %v79
    %v398 = vunpack.c.l.b16 %v80
    %v399 = vunpack.c.h.b16 %v80
    %v400 = vunpack.c.l.b16 %v81
    %v401 = vunpack.c.h.b16 %v81
    %v402 = vunpack.c.l.b16 %v82
    %v403 = vunpack.c.h.b16 %v82
    %v404 = vunpack.c.l.b16 %v83
    %v405 = vunpack.c.h.b16 %v83
    %v406 = vunpack.c.l.b16 %v84
    %v407 = vunpack.c.h.b16 %v84
    %v408 = vunpack.c.l.b16 %v85
    %v409 = vunpack.c.h.b16 %v85
    %v410 = vunpack.c.l.b16 %v86
    %v411 = vunpack.c.h.b16 %v86
    %v412 = vunpack.c.l.b16 %v87
    %v413 = vunpack.c.h.b16 %v87
    %v414 = vunpack.c.l.b16 %v88
    %v415 = vunpack.c.h.b16 %v88
    %v416 = vunpack.c.l.b16 %v89
    %v417 = vunpack.c.h.b16 %v89
    %v418 = vunpack.c.l.b16 %v90
    %v419 = vunpack.c.h.b16 %v90
    %v420 = vunpack.c.l.b16 %v91
    %v421 = vunpack.c.h.b16 %v91
    %v422 = vunpack.c.l.b16 %v92
    %v423 = vunpack.c.h.b16 %v92
    %v424 = vunpack.c.l.b16 %v93
    %v425 = vunpack.c.h.b16 %v93
    %v426 = vunpack.c.l.b16 %v94
    %v427 = vunpack.c.h.b16 %v94
    %v428 = vunpack.c.l.b16 %v95
    %v429 = vunpack.c.h.b16 %v95
    %v430 = vunpack.c.l.b16 %v96
    %v431 = vunpack.c.h.b16 %v96
    %v432 = vunpack.c.l.b16 %v97
    %v433 = vunpack.c.h.b16 %v97
    %v434 = vunpack.c.l.b16 %v98
    %v435 = vunpack.c.h.b16 %v98
    %v436 = vunpack.c.l.b16 %v99
    %v437 = vunpack.c.h.b16 %v99
    %v438 = vunpack.c.l.b16 %v100
    %v439 = vunpack.c.h.b16 %v100
    %v440 = vunpack.c.l.b16 %v101
    %v441 = vunpack.c.h.b16 %v101
    %v442 = vunpack.c.l.b16 %v102
    %v443 = vunpack.c.h.b16 %v102
    %v444 = vunpack.c.l.b16 %v103
    %v445 = vunpack.c.h.b16 %v103
    %v446 = vunpack.c.l.b16 %v104
    %v447 = vunpack.c.h.b16 %v104
    %v448 = vunpack.c.l.b16 %v105
    %v449 = vunpack.c.h.b16 %v105
    %v450 = vunpack.c.l.b16 %v106
    %v451 = vunpack.c.h.b16 %v106
    %v452 = vunpack.c.l.b16 %v107
    %v453 = vunpack.c.h.b16 %v107
    %v454 = vunpack.c.l.b16 %v108
    %v455 = vunpack.c.h.b16 %v108
    %v456 = vunpack.c.l.b16 %v109
    %v457 = vunpack.c.h.b16 %v109
    %v458 = vunpack.c.l.b16 %v110
    %v459 = vunpack.c.h.b16 %v110
    %v460 = vunpack.c.l.b16 %v111
    %v461 = vunpack.c.h.b16 %v111
    %v462 = vunpack.c.l.b16 %v112
    %v463 = vunpack.c.h.b16 %v112
    %v464 = vunpack.c.l.b16 %v113
    %v465 = vunpack.c.h.b16 %v113
    %v466 = vunpack.c.l.b16 %v114
    %v467 = vunpack.c.h.b16 %v114
    %v468 = vunpack.c.l.b16 %v115
    %v469 = vunpack.c.h.b16 %v115
    %v470 = vunpack.c.l.b16 %v116
    %v471 = vunpack.c.h.b16 %v116
    %v472 = vunpack.c.l.b16 %v117
    %v473 = vunpack.c.h.b16 %v117
    %v474 = vunpack.c.l.b16 %v118
    %v475 = vunpack.c.h.b16 %v118
    %v476 = vunpack.c.l.b16 %v119
    %v477 = vunpack.c.h.b16 %v119
    %v478 = vunpack.c.l.b16 %v120
    %v479 = vunpack.c.h.b16 %v120
    %v480 = vunpack.c.l.b16 %v121
    %v481 = vunpack.c.h.b16 %v121
    %v482 = vunpack.c.l.b16 %v122
    %v483 = vunpack.c.h.b16 %v122
    %v484 = vunpack.c.l.b16 %v123
    %v485 = vunpack.c.h.b16 %v123
    %v486 = vunpack.c.l.b16 %v124
    %v487 = vunpack.c.h.b16 %v124
    %v488 = vunpack.c.l.b16 %v125
    %v489 = vunpack.c.h.b16 %v125
    %v490 = vunpack.c.l.b16 %v126
    %v491 = vunpack.c.h.b16 %v126
    %v492 = vunpack.c.l.b16 %v127
    %v493 = vunpack.c.h.b16 %v127
    %v494 = vunpack.c.l.b16 %v128
    %v495 = vunpack.c.h.b16 %v128
    %v496 = vunpack.c.l.b16 %v129
    %v497 = vunpack.c.h.b16 %v129
    %v498 = vunpack.c.l.b16 %v130
    %v499 = vunpack.c.h.b16 %v130
    %v500 = vunpack.c.l.b16 %v131
    %v501 = vunpack.c.h.b16 %v131
    %v502 = vunpack.c.l.b16 %v132
    %v503 = vunpack.c.h.b16 %v132
    %v504 = vunpack.c.l.b16 %v133
    %v505 = vunpack.c.h.b16 %v133
    %v506 = vunpack.c.l.b16 %v134
    %v507 = vunpack.c.h.b16 %v134
    %v508 = vunpack.c.l.b16 %v135
    %v509 = vunpack.c.h.b16 %v135
    %v510 = vunpack.c.l.b16 %v136
    %v511 = vunpack.c.h.b16 %v136
    %v512 = vunpack.c.l.b16 %v137
    %v513 = vunpack.c.h.b16 %v137
    %v514 = vunpack.c.l.b16 %v138
    %v515 = vunpack.c.h.b16 %v138
    %v516 = vunpack.c.l.b16 %v139
    %v517 = vunpack.c.h.b16 %v139
    %v518 = vunpack.c.l.b16 %v140
    %v519 = vunpack.c.h.b16 %v140
    %v520 = vunpack.c.l.b16 %v141
    %v521 = vunpack.c.h.b16 %v141
    %v522 = vunpack.c.l.b16 %v142
    %v523 = vunpack.c.h.b16 %v142
    %v524 = vunpack.c.l.b16 %v143
    %v525 = vunpack.c.h.b16 %v143
    %v526 = vunpack.c.l.b16 %v144
    %v527 = vunpack.c.h.b16 %v144
    %v528 = vunpack.c.l.b16 %v145
    %v529 = vunpack.c.h.b16 %v145
    %v530 = vunpack.c.l.b16 %v146
    %v531 = vunpack.c.h.b16 %v146
    %v532 = vunpack.c.l.b16 %v147
    %v533 = vunpack.c.h.b16 %v147
    %v534 = vunpack.c.l.b16 %v148
    %v535 = vunpack.c.h.b16 %v148
    %v536 = vunpack.c.l.b16 %v149
    %v537 = vunpack.c.h.b16 %v149
    %v538 = vunpack.c.l.b16 %v150
    %v539 = vunpack.c.h.b16 %v150
    %v540 = vunpack.c.l.b16 %v151
    %v541 = vunpack.c.h.b16 %v151
    %v542 = vunpack.c.l.b16 %v152
    %v543 = vunpack.c.h.b16 %v152
    %v544 = vunpack.c.l.b16 %v153
    %v545 = vunpack.c.h.b16 %v153
    %v546 = vunpack.c.l.b16 %v154
    %v547 = vunpack.c.h.b16 %v154
    %v548 = vunpack.c.l.b16 %v155
    %v549 = vunpack.c.h.b16 %v155
    %v550 = vunpack.c.l.b16 %v156
    %v551 = vunpack.c.h.b16 %v156
    %v552 = vunpack.c.l.b16 %v157
    %v553 = vunpack.c.h.b16 %v157
    %v554 = vunpack.c.l.b16 %v158
    %v555 = vunpack.c.h.b16 %v158
    %v556 = vunpack.c.l.b16 %v159
    %v557 = vunpack.c.h.b16 %v159
    %v558 = vunpack.c.l.b16 %v160
    %v559 = vunpack.c.h.b16 %v160
    %v560 = vunpack.c.l.b16 %v161
    %v561 = vunpack.c.h.b16 %v161
    %v562 = vunpack.c.l.b16 %v162
    %v563 = vunpack.c.h.b16 %v162
    %v564 = vunpack.c.l.b16 %v163
    %v565 = vunpack.c.h.b16 %v163
    %v566 = vunpack.c.l.b16 %v164
    %v567 = vunpack.c.h.b16 %v164
    %v568 = vunpack.c.l.b16 %v165
    %v569 = vunpack.c.h.b16 %v165
    %v570 = vunpack.c.l.b16 %v166
    %v571 = vunpack.c.h.b16 %v166
    %v572 = vunpack.c.l.b16 %v167
    %v573 = vunpack.c.h.b16 %v167
    %v574 = vunpack.c.l.b16 %v168
    %v575 = vunpack.c.h.b16 %v168
    %v576 = vunpack.c.l.b16 %v169
    %v577 = vunpack.c.h.b16 %v169
    %v578 = vunpack.c.l.b16 %v170
    %v579 = vunpack.c.h.b16 %v170
    %v580 = vunpack.c.l.b16 %v171
    %v581 = vunpack.c.h.b16 %v171
    %v582 = vunpack.c.l.b16 %v172
    %v583 = vunpack.c.h.b16 %v172
    %v584 = vunpack.c.l.b16 %v173
    %v585 = vunpack.c.h.b16 %v173
    %v586 = vunpack.c.l.b16 %v174
    %v587 = vunpack.c.h.b16 %v174
    %v588 = vunpack.c.l.b16 %v175
    %v589 = vunpack.c.h.b16 %v175
    %v590 = vunpack.c.l.b16 %v176
    %v591 = vunpack.c.h.b16 %v176
    %v592 = vunpack.c.l.b16 %v177
    %v593 = vunpack.c.h.b16 %v177
    %v594 = vunpack.c.l.b16 %v178
    %v595 = vunpack.c.h.b16 %v178
    %v596 = vunpack.c.l.b16 %v179
    %v597 = vunpack.c.h.b16 %v179
    %v598 = vunpack.c.l.b16 %v180
    %v599 = vunpack.c.h.b16 %v180
    %v600 = vunpack.c.l.b16 %v181
    %v601 = vunpack.c.h.b16 %v181
    %v602 = vpack.c.b16 %v350, %v346
    %v603 = vpack.c.b16 %v351, %v347
    %v604 = vpack.c.b16 %v352, %v348
    %v605 = vpack.c.b16 %v353, %v349
    %v606 = vpack.c.b16 %v358, %v354
    %v607 = vpack.c.b16 %v359, %v355
    %v608 = vpack.c.b16 %v360, %v356
    %v609 = vpack.c.b16 %v361, %v357
    %v610 = vpack.c.b16 %v366, %v362
    %v611 = vpack.c.b16 %v367, %v363
    %v612 = vpack.c.b16 %v368, %v364
    %v613 = vpack.c.b16 %v369, %v365
    %v614 = vpack.c.b16 %v374, %v370
    %v615 = vpack.c.b16 %v375, %v371
    %v616 = vpack.c.b16 %v376, %v372
    %v617 = vpack.c.b16 %v377, %v373
    %v618 = vpack.c.b16 %v382, %v378
    %v619 = vpack.c.b16 %v383, %v379
    %v620 = vpack.c.b16 %v384, %v380
    %v621 = vpack.c.b16 %v385, %v381
    %v622 = vpack.c.b16 %v390, %v386
    %v623 = vpack.c.b16 %v391, %v387
    %v624 = vpack.c.b16 %v392, %v388
    %v625 = vpack.c.b16 %v393, %v389
    %v626 = vpack.c.b16 %v398, %v394
    %v627 = vpack.c.b16 %v399, %v395
    %v628 = vpack.c.b16 %v400, %v396
    %v629 = vpack.c.b16 %v401, %v397
    %v630 = vpack.c.b16 %v406, %v402
    %v631 = vpack.c.b16 %v407, %v403
    %v632 = vpack.c.b16 %v408, %v404
    %v633 = vpack.c.b16 %v409, %v405
    %v634 = vpack.c.b16 %v414, %v410
    %v635 = vpack.c.b16 %v415, %v411
    %v636 = vpack.c.b16 %v416, %v412
    %v637 = vpack.c.b16 %v417, %v413
    %v638 = vpack.c.b16 %v422, %v418
    %v639 = vpack.c.b16 %v423, %v419
    %v640 = vpack.c.b16 %v424, %v420
    %v641 = vpack.c.b16 %v425, %v421
    %v642 = vpack.c.b16 %v430, %v426
    %v643 = vpack.c.b16 %v431, %v427
    %v644 = vpack.c.b16 %v432, %v428
    %v645 = vpack.c.b16 %v433, %v429
    %v646 = vpack.c.b16 %v438, %v434
    %v647 = vpack.c.b16 %v439, %v435
    %v648 = vpack.c.b16 %v440, %v436
    %v649 = vpack.c.b16 %v441, %v437
    %v650 = vpack.c.b16 %v446, %v442
    %v651 = vpack.c.b16 %v447, %v443
    %v652 = vpack.c.b16 %v448, %v444
    %v653 = vpack.c.b16 %v449, %v445
    %v654 = vpack.c.b16 %v454, %v450
    %v655 = vpack.c.b16 %v455, %v451
    %v656 = vpack.c.b16 %v456, %v452
    %v657 = vpack.c.b16 %v457, %v453
    %v658 = vpack.c.b16 %v462, %v458
    %v659 = vpack.c.b16 %v463, %v459
    %v660 = vpack.c.b16 %v464, %v460
    %v661 = vpack.c.b16 %v465, %v461
    %v662 = vpack.c.b16 %v470, %v466
    %v663 = vpack.c.b16 %v471, %v467
    %v664 = vpack.c.b16 %v472, %v468
    %v665 = vpack.c.b16 %v473, %v469
    %v666 = vpack.c.b16 %v478, %v474
    %v667 = vpack.c.b16 %v479, %v475
    %v668 = vpack.c.b16 %v480, %v476
    %v669 = vpack.c.b16 %v481, %v477
    %v670 = vpack.c.b16 %v486, %v482
    %v671 = vpack.c.b16 %v487, %v483
    %v672 = vpack.c.b16 %v488, %v484
    %v673 = vpack.c.b16 %v489, %v485
    %v674 = vpack.c.b16 %v494, %v490
    %v675 = vpack.c.b16 %v495, %v491
    %v676 = vpack.c.b16 %v496, %v492
    %v677 = vpack.c.b16 %v497, %v493
    %v678 = vpack.c.b16 %v502, %v498
    %v679 = vpack.c.b16 %v503, %v499
    %v680 = vpack.c.b16 %v504, %v500
    %v681 = vpack.c.b16 %v505, %v501
    %v682 = vpack.c.b16 %v510, %v506
    %v683 = vpack.c.b16 %v511, %v507
    %v684 = vpack.c.b16 %v512, %v508
    %v685 = vpack.c.b16 %v513, %v509
    %v686 = vpack.c.b16 %v518, %v514
    %v687 = vpack.c.b16 %v519, %v515
    %v688 = vpack.c.b16 %v520, %v516
    %v689 = vpack.c.b16 %v521, %v517
    %v690 = vpack.c.b16 %v526, %v522
    %v691 = vpack.c.b16 %v527, %v523
    %v692 = vpack.c.b16 %v528, %v524
    %v693 = vpack.c.b16 %v529, %v525
    %v694 = vpack.c.b16 %v534, %v530
    %v695 = vpack.c.b16 %v535, %v531
    %v696 = vpack.c.b16 %v536, %v532
    %v697 = vpack.c.b16 %v537, %v533
    %v698 = vpack.c.b16 %v542, %v538
    %v699 = vpack.c.b16 %v543, %v539
    %v700 = vpack.c.b16 %v544, %v540
    %v701 = vpack.c.b16 %v545, %v541
    %v702 = vpack.c.b16 %v550, %v546
    %v703 = vpack.c.b16 %v551, %v547
    %v704 = vpack.c.b16 %v552, %v548
    %v705 = vpack.c.b16 %v553, %v549
    %v706 = vpack.c.b16 %v558, %v554
    %v707 = vpack.c.b16 %v559, %v555
    %v708 = vpack.c.b16 %v560, %v556
    %v709 = vpack.c.b16 %v561, %v557
    %v710 = vpack.c.b16 %v566, %v562
    %v711 = vpack.c.b16 %v567, %v563
    %v712 = vpack.c.b16 %v568, %v564
    %v713 = vpack.c.b16 %v569, %v565
    %v714 = vpack.c.b16 %v574, %v570
    %v715 = vpack.c.b16 %v575, %v571
    %v716 = vpack.c.b16 %v576, %v572
    %v717 = vpack.c.b16 %v577, %v573
    %v718 = vpack.c.b16 %v582, %v578
    %v719 = vpack.c.b16 %v583, %v579
    %v720 = vpack.c.b16 %v584, %v580
    %v721 = vpack.c.b16 %v585, %v581
    %v722 = vpack.c.b16 %v590, %v586
    %v723 = vpack.c.b16 %v591, %v587
    %v724 = vpack.c.b16 %v592, %v588
    %v725 = vpack.c.b16 %v593, %v589
    %v726 = vpack.c.b16 %v598, %v594
    %v727 = vpack.c.b16 %v599, %v595
    %v728 = vpack.c.b16 %v600, %v596
    %v729 = vpack.c.b16 %v601, %v597
    %858 = vmatprep.subr.bf16.mxu0 %v631
    %859 = vmatpush1.bf16.msra.mxu0 %v630
    %860 = vmatprep.subr.bf16.mxu0 %v627
    %861 = vmatpush1.bf16.msra.mxu0 %v626
    %862 = vmatprep.subr.bf16.mxu0 %v623
    %863 = vmatpush1.bf16.msra.mxu0 %v622
    %864 = vmatprep.subr.bf16.mxu0 %v619
    %865 = vmatpush1.bf16.msra.mxu0 %v618
    %866 = vmatprep.subr.bf16.mxu0 %v615
    %867 = vmatpush1.bf16.msra.mxu0 %v614
    %868 = vmatprep.subr.bf16.mxu0 %v611
    %869 = vmatpush1.bf16.msra.mxu0 %v610
    %870 = vmatprep.subr.bf16.mxu0 %v607
    %871 = vmatpush1.bf16.msra.mxu0 %v606
    %872 = vmatprep.subr.bf16.mxu0 %v603
    %873 = vmatpush1.bf16.msra.mxu0 %v602
    %874 = vmatprep.subr.bf16.mxu0 %v663
    %875 = vmatpush2.bf16.msra.mxu0 %v662
    %876 = vmatprep.subr.bf16.mxu0 %v659
    %877 = vmatpush2.bf16.msra.mxu0 %v658
    %878 = vmatprep.subr.bf16.mxu0 %v655
    %879 = vmatpush2.bf16.msra.mxu0 %v654
    %880 = vmatprep.subr.bf16.mxu0 %v651
    %881 = vmatpush2.bf16.msra.mxu0 %v650
    %882 = vmatprep.subr.bf16.mxu0 %v647
    %883 = vmatpush2.bf16.msra.mxu0 %v646
    %884 = vmatprep.subr.bf16.mxu0 %v643
    %885 = vmatpush2.bf16.msra.mxu0 %v642
    %886 = vmatprep.subr.bf16.mxu0 %v639
    %887 = vmatpush2.bf16.msra.mxu0 %v638
    %888 = vmatprep.subr.bf16.mxu0 %v635
    %889 = vmatpush2.bf16.msra.mxu0 %v634
    %890 = vmatprep.mubr.bf16.mxu0 %v211
    %891 = vmatmul.mubr.bf16.gmra.mxu0 %v210
    %v892 = vpop.f32.mrf.mxu0
    %v893 = vadd.f32 %v187, %v892
    %v894 = vpop.f32.mrf.mxu0
    %v895 = vadd.f32 %v191, %v894
    %v896 = vpop.f32.mrf.mxu0
    %v897 = vpop.f32.mrf.mxu0
    %898 = vdwg.mxu0
    %899 = vmatprep.subr.bf16.mxu0 %v695
    %900 = vmatpush1.bf16.msra.mxu0 %v694
    %901 = vmatprep.subr.bf16.mxu0 %v691
    %902 = vmatpush1.bf16.msra.mxu0 %v690
    %903 = vmatprep.subr.bf16.mxu0 %v687
    %904 = vmatpush1.bf16.msra.mxu0 %v686
    %905 = vmatprep.subr.bf16.mxu0 %v683
    %906 = vmatpush1.bf16.msra.mxu0 %v682
    %907 = vmatprep.subr.bf16.mxu0 %v679
    %908 = vmatpush1.bf16.msra.mxu0 %v678
    %909 = vmatprep.subr.bf16.mxu0 %v675
    %910 = vmatpush1.bf16.msra.mxu0 %v674
    %911 = vmatprep.subr.bf16.mxu0 %v671
    %912 = vmatpush1.bf16.msra.mxu0 %v670
    %913 = vmatprep.subr.bf16.mxu0 %v667
    %914 = vmatpush1.bf16.msra.mxu0 %v666
    %915 = vmatprep.subr.bf16.mxu0 %v727
    %916 = vmatpush2.bf16.msra.mxu0 %v726
    %917 = vmatprep.subr.bf16.mxu0 %v723
    %918 = vmatpush2.bf16.msra.mxu0 %v722
    %919 = vmatprep.subr.bf16.mxu0 %v719
    %920 = vmatpush2.bf16.msra.mxu0 %v718
    %921 = vmatprep.subr.bf16.mxu0 %v715
    %922 = vmatpush2.bf16.msra.mxu0 %v714
    %923 = vmatprep.subr.bf16.mxu0 %v711
    %924 = vmatpush2.bf16.msra.mxu0 %v710
    %925 = vmatprep.subr.bf16.mxu0 %v707
    %926 = vmatpush2.bf16.msra.mxu0 %v706
    %927 = vmatprep.subr.bf16.mxu0 %v703
    %928 = vmatpush2.bf16.msra.mxu0 %v702
    %929 = vmatprep.subr.bf16.mxu0 %v699
    %930 = vmatpush2.bf16.msra.mxu0 %v698
    %931 = vmatprep.mubr.bf16.mxu0 %v213
    %932 = vmatmul.mubr.bf16.gmra.mxu0 %v212
    %v933 = vpop.f32.mrf.mxu0
    %v934 = vadd.f32 %v893, %v933
    %v935 = vpop.f32.mrf.mxu0
    %v936 = vadd.f32 %v895, %v935
    %v937 = vpop.f32.mrf.mxu0
    %v938 = vpop.f32.mrf.mxu0
    %939 = vdwg.mxu0
    %940 = vmatprep.subr.bf16.mxu0 %v633
    %941 = vmatpush1.bf16.msra.mxu0 %v632
    %942 = vmatprep.subr.bf16.mxu0 %v629
    %943 = vmatpush1.bf16.msra.mxu0 %v628
    %944 = vmatprep.subr.bf16.mxu0 %v625
    %945 = vmatpush1.bf16.msra.mxu0 %v624
    %946 = vmatprep.subr.bf16.mxu0 %v621
    %947 = vmatpush1.bf16.msra.mxu0 %v620
    %948 = vmatprep.subr.bf16.mxu0 %v617
    %949 = vmatpush1.bf16.msra.mxu0 %v616
    %950 = vmatprep.subr.bf16.mxu0 %v613
    %951 = vmatpush1.bf16.msra.mxu0 %v612
    %952 = vmatprep.subr.bf16.mxu0 %v609
    %953 = vmatpush1.bf16.msra.mxu0 %v608
    %954 = vmatprep.subr.bf16.mxu0 %v605
    %955 = vmatpush1.bf16.msra.mxu0 %v604
    %956 = vmatprep.subr.bf16.mxu0 %v665
    %957 = vmatpush2.bf16.msra.mxu0 %v664
    %958 = vmatprep.subr.bf16.mxu0 %v661
    %959 = vmatpush2.bf16.msra.mxu0 %v660
    %960 = vmatprep.subr.bf16.mxu0 %v657
    %961 = vmatpush2.bf16.msra.mxu0 %v656
    %962 = vmatprep.subr.bf16.mxu0 %v653
    %963 = vmatpush2.bf16.msra.mxu0 %v652
    %964 = vmatprep.subr.bf16.mxu0 %v649
    %965 = vmatpush2.bf16.msra.mxu0 %v648
    %966 = vmatprep.subr.bf16.mxu0 %v645
    %967 = vmatpush2.bf16.msra.mxu0 %v644
    %968 = vmatprep.subr.bf16.mxu0 %v641
    %969 = vmatpush2.bf16.msra.mxu0 %v640
    %970 = vmatprep.subr.bf16.mxu0 %v637
    %971 = vmatpush2.bf16.msra.mxu0 %v636
    %972 = vmatprep.mubr.bf16.mxu0 %v211
    %973 = vmatmul.mubr.bf16.gmra.mxu0 %v210
    %v974 = vpop.f32.mrf.mxu0
    %v975 = vadd.f32 %v195, %v974
    %v976 = vpop.f32.mrf.mxu0
    %v977 = vadd.f32 %v199, %v976
    %v978 = vpop.f32.mrf.mxu0
    %v979 = vpop.f32.mrf.mxu0
    %980 = vdwg.mxu0
    %981 = vmatprep.subr.bf16.mxu0 %v697
    %982 = vmatpush1.bf16.msra.mxu0 %v696
    %983 = vmatprep.subr.bf16.mxu0 %v693
    %984 = vmatpush1.bf16.msra.mxu0 %v692
    %985 = vmatprep.subr.bf16.mxu0 %v689
    %986 = vmatpush1.bf16.msra.mxu0 %v688
    %987 = vmatprep.subr.bf16.mxu0 %v685
    %988 = vmatpush1.bf16.msra.mxu0 %v684
    %989 = vmatprep.subr.bf16.mxu0 %v681
    %990 = vmatpush1.bf16.msra.mxu0 %v680
    %991 = vmatprep.subr.bf16.mxu0 %v677
    %992 = vmatpush1.bf16.msra.mxu0 %v676
    %993 = vmatprep.subr.bf16.mxu0 %v673
    %994 = vmatpush1.bf16.msra.mxu0 %v672
    %995 = vmatprep.subr.bf16.mxu0 %v669
    %996 = vmatpush1.bf16.msra.mxu0 %v668
    %997 = vmatprep.subr.bf16.mxu0 %v729
    %998 = vmatpush2.bf16.msra.mxu0 %v728
    %999 = vmatprep.subr.bf16.mxu0 %v725
    %1000 = vmatpush2.bf16.msra.mxu0 %v724
    %1001 = vmatprep.subr.bf16.mxu0 %v721
    %1002 = vmatpush2.bf16.msra.mxu0 %v720
    %1003 = vmatprep.subr.bf16.mxu0 %v717
    %1004 = vmatpush2.bf16.msra.mxu0 %v716
    %1005 = vmatprep.subr.bf16.mxu0 %v713
    %1006 = vmatpush2.bf16.msra.mxu0 %v712
    %1007 = vmatprep.subr.bf16.mxu0 %v709
    %1008 = vmatpush2.bf16.msra.mxu0 %v708
    %1009 = vmatprep.subr.bf16.mxu0 %v705
    %1010 = vmatpush2.bf16.msra.mxu0 %v704
    %1011 = vmatprep.subr.bf16.mxu0 %v701
    %1012 = vmatpush2.bf16.msra.mxu0 %v700
    %1013 = vmatprep.mubr.bf16.mxu0 %v213
    %1014 = vmatmul.mubr.bf16.gmra.mxu0 %v212
    %v1015 = vpop.f32.mrf.mxu0
    %v1016 = vadd.f32 %v975, %v1015
    %v1017 = vpop.f32.mrf.mxu0
    %v1018 = vadd.f32 %v977, %v1017
    %v1019 = vpop.f32.mrf.mxu0
    %v1020 = vpop.f32.mrf.mxu0
    %1021 = vdwg.mxu0
    %v1022 = vmul.f32 %v934, 0.2
    %v1023 = vmul.f32 %v936, 0.2
    %v1024 = vmul.f32 %v1016, 0.2
    %v1025 = vmul.f32 %v1018, 0.2
    %v1026 = vmax.f32 %v934, %v1022
    %v1027 = vmax.f32 %v936, %v1023
    %v1028 = vmax.f32 %v1016, %v1024
    %v1029 = vmax.f32 %v1018, %v1025
    %1030 = vst [vmem:[#allocation8] sm:$0xff] %v1026
    %1031 = vst [vmem:[#allocation8 + $0x8] sm:$0xff] %v1027
    %1032 = vst [vmem:[#allocation8 + $0x10] sm:$0xff] %v1028
    %1033 = vst [vmem:[#allocation8 + $0x18] sm:$0xff] %v1029
    // Predicated region
    $region26: #{tpu_custom_call.1} parent=1 // pred_check
      _
    $region27: #{tpu_custom_call.1} parent=1 // pred_check_branch
      %1035 = sbr.rel (0) target = $region29
    $region28: #{tpu_custom_call.1} parent=1 // pred_region
      %s1037 = ssub.s32 512, 512
      %1038 = vsyncadd [#allocation4], %s1037
      %s1040 = sshll.u32 [#allocation8], 4
      %s1041 = int_to_ptr.vmem [resolvable:$true] %s1040
      %1043 = dma.vmem_to_hbm [thread:$0]  %s1041, 512, %s3, [#allocation4]
    $region29: #{tpu_custom_call.1} parent=1 // pred_fallthru
      _
    // Predicated region
    $region30: #{tpu_custom_call.1} parent=1 // pred_check
      _
    $region31: #{tpu_custom_call.1} parent=1 // pred_check_branch
      %1045 = sbr.rel (0) target = $region33
    $region32: #{tpu_custom_call.1} parent=1 // pred_region
      %1046 = dma.done [#allocation4], 512
    $region33: #{tpu_custom_call.1} parent=1 // pred_fallthru
      _
    %1047 = vsyncpa [#allocation3], 1
    %1048 = vsyncpa [#allocation6], 1
    %1049 = vsyncpa [#allocation4], 1

</llo_original>
